<compile_context>
chip_gen: v6e
topology: v6e:2x2x1
jax: 0.10.0
libtpu: 0.0.40
codegen_flags: <defaults>
</compile_context>

<pallas_src>
import functools
import math

import jax
import jax.numpy as jnp
from jax.experimental import pallas as pl
from jax.experimental.pallas import tpu as pltpu


_LANES = 512                          # lane-dense last dim (multiple of 128)
_SUBLANE = 8
_BLOCK_BYTE_BUDGET = 4 * 1024 * 1024  # per-operand, per-block input bytes
_VMEM_LIMIT_BYTES = 32 * 1024 * 1024  # explicit scoped-VMEM limit, safe on v5e/v6e/v7x
_MIN_PALLAS_ELEMS = 1024              # below this, pallas_call launch cost dominates


def _round_up(x, m):
    return ((x + m - 1) // m) * m


def _eq_kernel(a_ref, b_ref, o_ref, *, dt):
    # Promote in vregs; the VALU has huge slack for a bandwidth-bound compare.
    o_ref[...] = a_ref[...].astype(dt) == b_ref[...].astype(dt)


def _eq_scalar_kernel(a_ref, s_ref, o_ref, *, dt):
    # s_ref is a (1,)-shaped SMEM ref: one scalar load, vector-vs-scalar compare.
    o_ref[...] = a_ref[...].astype(dt) == s_ref[0].astype(dt)


def _leading_broadcast_rows(big, small, out_shape, budget_rows):
    """If `small` broadcasts against `out_shape` purely along leading axes and
    its flattened suffix is a whole number of (8, _LANES) tiles fitting one
    block, return the suffix row count r_s; otherwise None."""
    if big.shape != tuple(out_shape):
        return None
    pad = len(out_shape) - small.ndim
    if pad < 0:
        return None
    ps = (1,) * pad + tuple(small.shape)
    nd = len(out_shape)
    k = None
    for j in range(nd + 1):
        if all(d == 1 for d in ps[:j]) and tuple(ps[j:]) == tuple(out_shape[j:]):
            k = j
            break
    if k is None or k == 0:
        return None
    s_size = math.prod(out_shape[k:]) if k < nd else 1
    if s_size % (_SUBLANE * _LANES) != 0:
        return None
    r_s = s_size // _LANES
    # Too-small suffix blocks would be dominated by per-grid-step overhead.
    if r_s < 64 or r_s > budget_rows:
        return None
    return r_s


def pallas_equal(input_, other_):
    """Reproduces torch semantics of `input_ == other_` (with broadcasting)."""
    a = jnp.asarray(input_)
    b = jnp.asarray(other_)
    out_shape = tuple(jnp.broadcast_shapes(a.shape, b.shape))
    # TODO(synk): jnp.promote_types may diverge from torch promotion in a few
    # mixed signed/unsigned corners; add a dtype-pair matrix if strict parity
    # is required.
    dt = jnp.promote_types(a.dtype, b.dtype)

    n = math.prod(out_shape) if out_shape else 1
    if n == 0 or n < _MIN_PALLAS_ELEMS:
        # Tiny / empty inputs: fixed launch + reshape plumbing costs more than
        # the compare itself.
        return jnp.equal(a, b)
    if a.dtype.itemsize > 4 or b.dtype.itemsize > 4:
        # TODO(synk): 64-bit dtypes (x64 mode) stay on the XLA path.
        return jnp.equal(a, b)

    max_item = max(a.dtype.itemsize, b.dtype.itemsize)
    budget_rows = max(
        _SUBLANE,
        (_BLOCK_BYTE_BUDGET // (_LANES * max_item)) // _SUBLANE * _SUBLANE,
    )

    # ---- classify operands -------------------------------------------------
    mode = None
    scalar_operand = None
    op_small = None
    r_s = None
    if a.shape == b.shape:
        mode, op_big, op_small = "elem", a, b
    elif b.size == 1:
        mode, op_big, scalar_operand = "scalar", a, b
    elif a.size == 1:                                    # eq is symmetric
        mode, op_big, scalar_operand = "scalar", b, a
    else:
        for big, small in ((a, b), (b, a)):
            r_s = _leading_broadcast_rows(big, small, out_shape, budget_rows)
            if r_s is not None:
                mode, op_big, op_small = "suffix", big, small
                break
        if mode is None:
            # TODO(synk): express the remaining broadcast patterns through the
            # BlockSpec index_map instead of materializing them in HBM.
            mode = "elem"
            op_big = jnp.broadcast_to(a, out_shape)
            op_small = jnp.broadcast_to(b, out_shape)

    # ---- lane-dense flat layout ---------------------------------------------
    rows = pl.cdiv(n, _LANES)
    lane_pad = rows * _LANES - n          # non-zero only when n % 512 != 0

    flat_big = op_big.reshape(-1)
    if lane_pad:
        flat_big = jnp.pad(flat_big, (0, lane_pad))
    big2 = flat_big.reshape(rows, _LANES)

    # ---- tile size ----------------------------------------------------------
    if mode == "suffix":
        tile_rows = r_s                    # one full repetition of the suffix
    elif rows <= budget_rows:
        if rows >= 2 * _SUBLANE:
            # >=2 grid steps: overlap in/out DMA with compute and allow the
            # "parallel" axis to shard across v7x's 2 TensorCores.
            tile_rows = _round_up(pl.cdiv(rows, 2), _SUBLANE)
        else:
            tile_rows = rows               # full-extent block (grid of 1)
    else:
        tile_rows = budget_rows

    # Ragged last block is fine: OOB reads feed a compare whose results are
    # never written; OOB output writes are masked by Pallas.
    grid = (pl.cdiv(rows, tile_rows),)

    tile_spec = pl.BlockSpec((tile_rows, _LANES), lambda i: (i, 0))

    if mode == "scalar":
        # Scalar operand rides in SMEM in a 32-bit container.
        if jnp.issubdtype(dt, jnp.floating):
            s_arr = scalar_operand.reshape(-1)[:1].astype(jnp.float32)
        else:
            s_arr = scalar_operand.reshape(-1)[:1].astype(jnp.int32)
        kernel = functools.partial(_eq_scalar_kernel, dt=dt)
        operands = (big2, s_arr)
        in_specs = [tile_spec, pl.BlockSpec(memory_space=pltpu.MemorySpace.SMEM)]
    else:
        if mode == "suffix":
            small2 = op_small.reshape(r_s, _LANES)
            small_spec = pl.BlockSpec((r_s, _LANES), lambda i: (0, 0))
        else:
            flat_small = op_small.reshape(-1)
            if lane_pad:
                flat_small = jnp.pad(flat_small, (0, lane_pad))
            small2 = flat_small.reshape(rows, _LANES)
            small_spec = pl.BlockSpec((tile_rows, _LANES), lambda i: (i, 0))
        kernel = functools.partial(_eq_kernel, dt=dt)
        operands = (big2, small2)
        in_specs = [tile_spec, small_spec]

    bytes_accessed = sum(int(op.size) * op.dtype.itemsize for op in operands)
    bytes_accessed += rows * _LANES        # bool output

    out2 = pl.pallas_call(
        kernel,
        out_shape=jax.ShapeDtypeStruct((rows, _LANES), jnp.bool_),
        grid=grid,
        in_specs=in_specs,
        out_specs=tile_spec,
        compiler_params=pltpu.CompilerParams(
            dimension_semantics=("parallel",),
            vmem_limit_bytes=_VMEM_LIMIT_BYTES,
        ),
        cost_estimate=pl.CostEstimate(
            flops=n, transcendentals=0, bytes_accessed=bytes_accessed
        ),
    )(*operands)

    if lane_pad:
        return out2.reshape(-1)[:n].reshape(out_shape)
    return out2.reshape(out_shape)


if __name__ == "__main__":
    key = jax.random.PRNGKey(0)
    ks = jax.random.split(key, 8)

    # 1) Module-consistent small shape: batch=2, channels=4, spatial=16x16.
    shape = (2, 4, 16, 16)
    x = jax.random.randint(ks[0], shape, minval=-2, maxval=3).astype(jnp.float32)
    y = jax.random.randint(ks[1], shape, minval=-2, maxval=3).astype(jnp.float32)
    out = jax.block_until_ready(pallas_equal(x, y))
    ref = jnp.equal(x, y)
    assert out.shape == ref.shape
    assert out.dtype == jnp.bool_
    assert bool(jnp.all(out == ref))

    # 2) Tensor vs scalar (SMEM scalar path).
    out_s = jax.block_until_ready(pallas_equal(x, jnp.float32(1.0)))
    assert bool(jnp.all(out_s == (x == 1.0)))

    # 3) Multi-step grid + in-kernel dtype promotion (f32 vs bf16).
    xi = jax.random.randint(ks[2], (256, 1024), minval=-2, maxval=3)
    yi = jax.random.randint(ks[3], (256, 1024), minval=-2, maxval=3)
    x3, y3 = xi.astype(jnp.float32), yi.astype(jnp.bfloat16)
    out3 = jax.block_until_ready(pallas_equal(x3, y3))
    assert bool(jnp.all(out3 == jnp.equal(x3, y3)))

    # 4) Leading-axis broadcast handled by the index_map (no broadcast_to).
    x4 = jax.random.randint(ks[4], (6, 64, 512), minval=-2, maxval=3).astype(jnp.float32)
    y4 = jax.random.randint(ks[5], (64, 512), minval=-2, maxval=3).astype(jnp.float32)
    out4 = jax.block_until_ready(pallas_equal(x4, y4))
    assert bool(jnp.all(out4 == jnp.equal(x4, y4)))

    # 5) Ragged cases: partial last row block, and non-multiple-of-512 lanes.
    x5 = jax.random.randint(ks[6], (20, 512), minval=-2, maxval=3).astype(jnp.float32)
    y5 = jax.random.randint(ks[7], (20, 512), minval=-2, maxval=3).astype(jnp.float32)
    out5 = jax.block_until_ready(pallas_equal(x5, y5))
    assert bool(jnp.all(out5 == jnp.equal(x5, y5)))

    x6 = x5.reshape(-1)[:2100].reshape(3, 700)
    y6 = y5.reshape(-1)[:2100].reshape(3, 700)
    out6 = jax.block_until_ready(pallas_equal(x6, y6))
    assert bool(jnp.all(out6 == jnp.equal(x6, y6)))

    print("KERNEL_OK")
</pallas_src>

<mosaic_0001>
module attributes {stable_mosaic.version = 11 : i64} {
  func.func @_eq_kernel(%arg0: i32, %arg1: memref<4x512xf32, #tpu.memory_space<vmem>>, %arg2: memref<4x512xf32, #tpu.memory_space<vmem>>, %arg3: memref<4x512xi32, #tpu.memory_space<vmem>>) attributes {dimension_semantics = [#tpu.dimension_semantics<parallel>], iteration_bounds = array<i64: 1>, scalar_prefetch = 0 : i64, scratch_operands = 0 : i64, tpu.core_type = #tpu.core_type<tc>, window_params = [{transform_indices = @transform_0, window_bounds = array<i64: 4, 512>}, {transform_indices = @transform_1, window_bounds = array<i64: 4, 512>}, {transform_indices = @transform_2, window_bounds = array<i64: 4, 512>}]} {
    %c0 = arith.constant 0 : index
    %c0_0 = arith.constant 0 : index
    %0 = vector.load %arg1[%c0, %c0_0] : memref<4x512xf32, #tpu.memory_space<vmem>>, vector<4x512xf32>
    %c0_1 = arith.constant 0 : index
    %c0_2 = arith.constant 0 : index
    %1 = vector.load %arg2[%c0_1, %c0_2] : memref<4x512xf32, #tpu.memory_space<vmem>>, vector<4x512xf32>
    %2 = arith.cmpf oeq, %0, %1 : vector<4x512xf32>
    %c0_3 = arith.constant 0 : index
    %c0_4 = arith.constant 0 : index
    %3 = vector.load %arg3[%c0_3, %c0_4] : memref<4x512xi32, #tpu.memory_space<vmem>>, vector<4x512xi32>
    %4 = arith.extui %2 : vector<4x512xi1> to vector<4x512xi32>
    %cst = arith.constant dense<0> : vector<4x512xi32>
    %5 = arith.cmpi ne, %3, %cst : vector<4x512xi32>
    tpu.vector_store %arg3[%c0_3, %c0_4], %4 {strides = array<i32>} : memref<4x512xi32, #tpu.memory_space<vmem>>, vector<4x512xi32>,
    return
  }
  func.func @transform_0(%arg0: i32) -> (i32, i32) {
    %c0_i32 = arith.constant 0 : i32
    %c0_i32_0 = arith.constant 0 : i32
    return %arg0, %c0_i32 : i32, i32
  }
  func.func @transform_1(%arg0: i32) -> (i32, i32) {
    %c0_i32 = arith.constant 0 : i32
    %c0_i32_0 = arith.constant 0 : i32
    return %arg0, %c0_i32 : i32, i32
  }
  func.func @transform_2(%arg0: i32) -> (i32, i32) {
    %c0_i32 = arith.constant 0 : i32
    %c0_i32_0 = arith.constant 0 : i32
    return %arg0, %c0_i32 : i32, i32
  }
}

</mosaic_0001>

<llo_original>
// kernel: tpu_custom_call.1
$region0: #{tpu_custom_call.1}
  #allocation0 [shape = 'u32[]', space=smem, size = 0x4, offset = 0x4, fixed_abs, tag = 'smem constant byte address 0x4 - core index']
  #allocation1 [shape = 'u32[144,128]{1,0:T(1,128)}', space=vmem, size = 0x12000, scoped, tag = 'internal scratch']
  %s0 = inlined_call_operand.hbm [shape: f32[4,512], index: 0, kind: input, shape index: {}]
  %s1 = inlined_call_operand.hbm [shape: f32[4,512], index: 1, kind: input, shape index: {}]
  %s2 = inlined_call_operand.vmem [shape: s32[4,512], index: 2, kind: output, shape index: {}]
  %s3 = sld [smem:[#allocation0]]
  $region26: #{tpu_custom_call.1} parent=0
    _
  %s5 = ssub.s32 1, %s3
  %s6 = scalar_select 0, %s5, %s3
  $region1: #{tpu_custom_call.1} parent=0
    #allocation2 [shape = 'u8[8192]{0}', space=vmem, size = 0x2000, scoped, tag = 'input window, operand 0, single buffered']
    #allocation3 [shape = 's32[1]{0}', space=sflag, size = 0x4, scoped, tag = 'scoped memory for tpu_custom_call.1']
    #allocation4 [shape = 'u8[8192]{0}', space=vmem, size = 0x2000, scoped, tag = 'input window, operand 1, single buffered']
    #allocation5 [shape = 's32[1]{0}', space=sflag, size = 0x4, scoped, tag = 'scoped memory for tpu_custom_call.1']
    %7 = vsyncpa [#allocation3], 0
    %8 = vsyncpa [#allocation5], 0
    // Predicated region
    $region2: #{tpu_custom_call.1} parent=1 // pred_check
      _
    $region3: #{tpu_custom_call.1} parent=1 // pred_check_branch
      %10 = sbr.rel (0) target = $region5
    $region4: #{tpu_custom_call.1} parent=1 // pred_region
      %s12 = ssub.s32 256, 256
      %13 = vsyncadd [#allocation3], %s12
      %s15 = sshll.u32 [#allocation2], 4
      %s16 = int_to_ptr.vmem [resolvable:$true] %s15
      %18 = dma.hbm_to_vmem [thread:$0]  %s0, 256, %s16, [#allocation3]
    $region5: #{tpu_custom_call.1} parent=1 // pred_fallthru
      _
    // Predicated region
    $region6: #{tpu_custom_call.1} parent=1 // pred_check
      _
    $region7: #{tpu_custom_call.1} parent=1 // pred_check_branch
      %20 = sbr.rel (0) target = $region9
    $region8: #{tpu_custom_call.1} parent=1 // pred_region
      %s22 = ssub.s32 256, 256
      %23 = vsyncadd [#allocation5], %s22
      %s25 = sshll.u32 [#allocation4], 4
      %s26 = int_to_ptr.vmem [resolvable:$true] %s25
      %28 = dma.hbm_to_vmem [thread:$0]  %s1, 256, %s26, [#allocation5]
    $region9: #{tpu_custom_call.1} parent=1 // pred_fallthru
      _
    // Predicated region
    $region10: #{tpu_custom_call.1} parent=1 // pred_check
      _
    $region11: #{tpu_custom_call.1} parent=1 // pred_check_branch
      %30 = sbr.rel (0) target = $region13
    $region12: #{tpu_custom_call.1} parent=1 // pred_region
      %31 = dma.done [#allocation3], 256
    $region13: #{tpu_custom_call.1} parent=1 // pred_fallthru
      _
    // Predicated region
    $region14: #{tpu_custom_call.1} parent=1 // pred_check
      _
    $region15: #{tpu_custom_call.1} parent=1 // pred_check_branch
      %33 = sbr.rel (0) target = $region17
    $region16: #{tpu_custom_call.1} parent=1 // pred_region
      %34 = dma.done [#allocation5], 256
    $region17: #{tpu_custom_call.1} parent=1 // pred_fallthru
      _
    %v35 = vld [vmem:[#allocation2] sm:$0xff]
    %v36 = vld [vmem:[#allocation2 + $0x8] sm:$0xff]
    %v37 = vld [vmem:[#allocation4] sm:$0xff]
    %v38 = vld [vmem:[#allocation4 + $0x8] sm:$0xff]
    %vm39 = vcmp.eq.f32.partialorder %v35, %v37
    %vm40 = vcmp.eq.f32.partialorder %v36, %v38
    %v41 = vsel %vm39, 1, 0
    %v42 = vsel %vm40, 1, 0
    %43 = vst [vmem:[%s2] sm:$0xff] %v41
    %44 = vst [vmem:[%s2 + $0x8] sm:$0xff] %v42
    // Predicated region
    $region18: #{tpu_custom_call.1} parent=1 // pred_check
      _
    $region19: #{tpu_custom_call.1} parent=1 // pred_check_branch
      %46 = sbr.rel (0) target = $region21
    $region20: #{tpu_custom_call.1} parent=1 // pred_region
      _
    $region21: #{tpu_custom_call.1} parent=1 // pred_fallthru
      _
    // Predicated region
    $region22: #{tpu_custom_call.1} parent=1 // pred_check
      _
    $region23: #{tpu_custom_call.1} parent=1 // pred_check_branch
      %48 = sbr.rel (0) target = $region25
    $region24: #{tpu_custom_call.1} parent=1 // pred_region
      _
    $region25: #{tpu_custom_call.1} parent=1 // pred_fallthru
      _
    %49 = vsyncpa [#allocation3], 1
    %50 = vsyncpa [#allocation5], 1

</llo_original>
